<compile_context>
chip_gen: v5e
topology: v5e:2x2
jax: 0.10.0
libtpu: 0.0.40
codegen_flags: <defaults>
</compile_context>

<pallas_src>
import functools

import jax
import jax.numpy as jnp
from jax import lax
from jax.experimental import pallas as pl
from jax.experimental.pallas import tpu as pltpu


def _round_up(a, b):
    return (a + b - 1) // b * b


def _pick_batch_tile(batch, image_bytes, budget, target):
    """Largest divisor of `batch` whose tile stays <= budget (>= target if possible)."""
    bt = 1
    for d in range(1, batch + 1):
        if batch % d:
            continue
        if d * image_bytes > budget:
            break
        bt = d
        if d * image_bytes >= target:
            break
    return bt


# ---------------------------------------------------------------------------
# Fast path: whole image(s) resident per grid step (single pass over HBM).
# ---------------------------------------------------------------------------
def _sa_loss_fast_kernel(x_ref, o_ref, *, hw, bt, masked):
    """x_ref: (bt, 3, S, 128) native dtype; o_ref: (1, 1, 1) f32 partial sum."""
    inv_hw = 1.0 / hw
    if masked:
        s_rows, n_lanes = x_ref.shape[2], x_ref.shape[3]
        rows = lax.broadcasted_iota(jnp.int32, (s_rows, n_lanes), 0)
        lanes = lax.broadcasted_iota(jnp.int32, (s_rows, n_lanes), 1)
        valid = (rows * n_lanes + lanes) < hw

    total = jnp.zeros((1, 1), jnp.float32)
    for i in range(bt):
        x0 = x_ref[i, 0].astype(jnp.float32)                      # (S, 128)
        x1 = x_ref[i, 1].astype(jnp.float32)
        x2 = x_ref[i, 2].astype(jnp.float32)
        # Per-channel spatial means (padded lanes are zero -> sums unaffected).
        m0 = jnp.sum(x0, axis=(0, 1), keepdims=True) * inv_hw     # (1, 1)
        m1 = jnp.sum(x1, axis=(0, 1), keepdims=True) * inv_hw
        m2 = jnp.sum(x2, axis=(0, 1), keepdims=True) * inv_hw
        d0 = x0 - m0
        d1 = x1 - m1
        d2 = x2 - m2
        k = jnp.sqrt(d0 * d0 + d1 * d1 + d2 * d2)                 # (S, 128)
        if masked:
            k = jnp.where(valid, k, 0.0)
        total = total + jnp.sum(k, axis=(0, 1), keepdims=True)
    o_ref[0] = total


# ---------------------------------------------------------------------------
# Large-image path: per-channel means precomputed (streaming XLA reduction),
# deviation norm computed on spatial tiles.
# ---------------------------------------------------------------------------
def _sa_loss_tiled_kernel(mean_ref, x_ref, o_ref, *, hw, s_tile, masked):
    """mean_ref: (1,3,1,1) f32; x_ref: (1,3,s_tile,128); o_ref: (1,1,1,1) f32."""
    x0 = x_ref[0, 0].astype(jnp.float32)                          # (s_tile, 128)
    x1 = x_ref[0, 1].astype(jnp.float32)
    x2 = x_ref[0, 2].astype(jnp.float32)
    d0 = x0 - mean_ref[0, 0]
    d1 = x1 - mean_ref[0, 1]
    d2 = x2 - mean_ref[0, 2]
    k = jnp.sqrt(d0 * d0 + d1 * d1 + d2 * d2)
    if masked:
        s = pl.program_id(1)
        rows = lax.broadcasted_iota(jnp.int32, (s_tile, 128), 0)
        lanes = lax.broadcasted_iota(jnp.int32, (s_tile, 128), 1)
        flat = (s * s_tile + rows) * 128 + lanes
        k = jnp.where(flat < hw, k, 0.0)
    o_ref[0, 0] = jnp.sum(k, axis=(0, 1), keepdims=True)


def sa_loss(x, *, fast_image_bytes_limit=4 * 1024 * 1024, spatial_tile=512):
    """Pallas Sa_Loss forward.  x: (B, 3, H, W) -> scalar float32."""
    B, C, H, W = x.shape
    assert C == 3, "Sa_Loss expects RGB input (C == 3)"
    assert spatial_tile % 8 == 0
    hw = H * W
    itemsize = jnp.dtype(x.dtype).itemsize

    xf = x.reshape(B, C, hw)                       # contiguous view, no copy
    S = pl.cdiv(hw, 128)                           # lane rows per image/channel
    image_f32_bytes = 3 * S * 128 * 4              # one image upcast to f32

    if image_f32_bytes <= fast_image_bytes_limit:
        # -------- single-pass, whole-image(s)-per-step path ------------------
        hw_pad = S * 128
        masked = hw_pad != hw
        if masked:
            xf = jnp.pad(xf, ((0, 0), (0, 0), (0, hw_pad - hw)))
        xr = xf.reshape(B, C, S, 128)

        bt = _pick_batch_tile(B, image_f32_bytes,
                              budget=fast_image_bytes_limit,
                              target=512 * 1024)
        g = B // bt
        out = pl.pallas_call(
            functools.partial(_sa_loss_fast_kernel, hw=hw, bt=bt, masked=masked),
            out_shape=jax.ShapeDtypeStruct((g, 1, 1), jnp.float32),
            grid=(g,),
            in_specs=[pl.BlockSpec((bt, C, S, 128), lambda i: (i, 0, 0, 0))],
            out_specs=pl.BlockSpec((1, 1, 1), lambda i: (i, 0, 0)),
            compiler_params=pltpu.CompilerParams(
                dimension_semantics=("parallel",)),
            cost_estimate=pl.CostEstimate(
                flops=12 * B * hw,
                transcendentals=B * hw,
                bytes_accessed=B * 3 * hw_pad * itemsize + g * 4),
        )(xr)
        return (jnp.sum(out) / (B * hw)).astype(jnp.float32)

    # -------- large-image two-pass (spatially tiled) path ---------------------
    # Means via a streaming XLA reduction (HBM roofline); total traffic ~2x the
    # single-pass minimum, which beats OOM-ing VMEM on v7x (64 MiB physical).
    means = (jnp.sum(xf, axis=2, dtype=jnp.float32) / hw).reshape(B, C, 1, 1)

    s_tile = min(spatial_tile, S)
    S2 = _round_up(S, s_tile)
    hw_pad = S2 * 128
    masked = hw_pad != hw
    if masked:
        xf = jnp.pad(xf, ((0, 0), (0, 0), (0, hw_pad - hw)))
    xr = xf.reshape(B, C, S2, 128)
    ns = S2 // s_tile

    out = pl.pallas_call(
        functools.partial(_sa_loss_tiled_kernel, hw=hw, s_tile=s_tile,
                          masked=masked),
        out_shape=jax.ShapeDtypeStruct((B, ns, 1, 1), jnp.float32),
        grid=(B, ns),
        in_specs=[
            pl.BlockSpec((1, C, 1, 1), lambda b, s: (b, 0, 0, 0)),
            pl.BlockSpec((1, C, s_tile, 128), lambda b, s: (b, 0, s, 0)),
        ],
        out_specs=pl.BlockSpec((1, 1, 1, 1), lambda b, s: (b, s, 0, 0)),
        compiler_params=pltpu.CompilerParams(
            dimension_semantics=("parallel", "parallel")),
        cost_estimate=pl.CostEstimate(
            flops=9 * B * hw,
            transcendentals=B * hw,
            bytes_accessed=B * 3 * hw_pad * itemsize + B * 3 * 4 + B * ns * 4),
    )(means, xr)
    return (jnp.sum(out) / (B * hw)).astype(jnp.float32)


sa_loss_jit = jax.jit(sa_loss)


def _sa_loss_ref(x):
    """Pure-JAX reference mirroring the PyTorch module."""
    x = x.astype(jnp.float32)
    mean_rgb = jnp.mean(x, axis=(2, 3), keepdims=True)            # (B, 3, 1, 1)
    d = x - mean_rgb
    k = jnp.sqrt(jnp.sum(d * d, axis=1, keepdims=True))           # (B, 1, H, W)
    return jnp.mean(k)


if __name__ == "__main__":
    # 1) Fast path, f32, H*W a multiple of 128.
    x = jax.random.uniform(jax.random.PRNGKey(0), (2, 3, 16, 16), jnp.float32)
    loss = jax.block_until_ready(sa_loss_jit(x))
    ref = _sa_loss_ref(x)
    assert loss.shape == () and loss.dtype == jnp.float32
    assert jnp.allclose(loss, ref, rtol=1e-4, atol=1e-5), (loss, ref)

    # 2) Fast path, bf16 input (no wrapper cast), H*W NOT a multiple of 128
    #    (exercises the pad + lane-mask path).
    xb = jax.random.uniform(jax.random.PRNGKey(1), (2, 3, 12, 12), jnp.bfloat16)
    loss_b = jax.block_until_ready(sa_loss_jit(xb))
    ref_b = _sa_loss_ref(xb)
    assert jnp.allclose(loss_b, ref_b, rtol=1e-4, atol=1e-5), (loss_b, ref_b)

    # 3) Force the large-image (spatially tiled, two-pass) path at a small size.
    x3 = jax.random.uniform(jax.random.PRNGKey(2), (2, 3, 48, 48), jnp.float32)
    tiled_fn = jax.jit(functools.partial(sa_loss,
                                         fast_image_bytes_limit=0,
                                         spatial_tile=8))
    loss_t = jax.block_until_ready(tiled_fn(x3))
    ref_t = _sa_loss_ref(x3)
    assert jnp.allclose(loss_t, ref_t, rtol=1e-4, atol=1e-5), (loss_t, ref_t)

    print("KERNEL_OK")
</pallas_src>

<mosaic_0001>
module attributes {stable_mosaic.version = 11 : i64} {
  func.func @_sa_loss_fast_kernel(%arg0: i32, %arg1: memref<2x3x2x128xf32, #tpu.memory_space<vmem>>, %arg2: memref<1x1x1xf32, #tpu.memory_space<vmem>>) attributes {dimension_semantics = [#tpu.dimension_semantics<parallel>], iteration_bounds = array<i64: 1>, scalar_prefetch = 0 : i64, scratch_operands = 0 : i64, tpu.core_type = #tpu.core_type<tc>, window_params = [{transform_indices = @transform_0, window_bounds = array<i64: 2, 3, 2, 128>}, {transform_indices = @transform_1, window_bounds = array<i64: 1, 1, 1>}]} {
    %cst = arith.constant 0.000000e+00 : f32
    %0 = vector.broadcast %cst : f32 to vector<1x1xf32>
    %c0 = arith.constant 0 : index
    %c0_0 = arith.constant 0 : index
    %c0_1 = arith.constant 0 : index
    %c0_2 = arith.constant 0 : index
    %1 = vector.load %arg1[%c0, %c0_0, %c0_1, %c0_2] : memref<2x3x2x128xf32, #tpu.memory_space<vmem>>, vector<1x1x2x128xf32>
    %2 = vector.shape_cast %1 : vector<1x1x2x128xf32> to vector<2x128xf32>
    %c0_3 = arith.constant 0 : index
    %c1 = arith.constant 1 : index
    %c0_4 = arith.constant 0 : index
    %c0_5 = arith.constant 0 : index
    %3 = vector.load %arg1[%c0_3, %c1, %c0_4, %c0_5] : memref<2x3x2x128xf32, #tpu.memory_space<vmem>>, vector<1x1x2x128xf32>
    %4 = vector.shape_cast %3 : vector<1x1x2x128xf32> to vector<2x128xf32>
    %c0_6 = arith.constant 0 : index
    %c2 = arith.constant 2 : index
    %c0_7 = arith.constant 0 : index
    %c0_8 = arith.constant 0 : index
    %5 = vector.load %arg1[%c0_6, %c2, %c0_7, %c0_8] : memref<2x3x2x128xf32, #tpu.memory_space<vmem>>, vector<1x1x2x128xf32>
    %6 = vector.shape_cast %5 : vector<1x1x2x128xf32> to vector<2x128xf32>
    %7 = vector.shape_cast %2 : vector<2x128xf32> to vector<1x2x128xf32>
    %cst_9 = arith.constant dense<0.000000e+00> : vector<1xf32>
    %8 = vector.multi_reduction <add>, %7, %cst_9 [1, 2] : vector<1x2x128xf32> to vector<1xf32>
    %9 = vector.shape_cast %8 : vector<1xf32> to vector<1x1x1xf32>
    %10 = vector.extract %9[0, 0, 0] : f32 from vector<1x1x1xf32>
    %11 = vector.broadcast %10 : f32 to vector<1x1xf32>
    %cst_10 = arith.constant 3.906250e-03 : f32
    %12 = vector.broadcast %cst_10 : f32 to vector<1x1xf32>
    %13 = arith.mulf %11, %12 : vector<1x1xf32>
    %14 = vector.shape_cast %4 : vector<2x128xf32> to vector<1x2x128xf32>
    %cst_11 = arith.constant dense<0.000000e+00> : vector<1xf32>
    %15 = vector.multi_reduction <add>, %14, %cst_11 [1, 2] : vector<1x2x128xf32> to vector<1xf32>
    %16 = vector.shape_cast %15 : vector<1xf32> to vector<1x1x1xf32>
    %17 = vector.extract %16[0, 0, 0] : f32 from vector<1x1x1xf32>
    %18 = vector.broadcast %17 : f32 to vector<1x1xf32>
    %cst_12 = arith.constant 3.906250e-03 : f32
    %19 = vector.broadcast %cst_12 : f32 to vector<1x1xf32>
    %20 = arith.mulf %18, %19 : vector<1x1xf32>
    %21 = vector.shape_cast %6 : vector<2x128xf32> to vector<1x2x128xf32>
    %cst_13 = arith.constant dense<0.000000e+00> : vector<1xf32>
    %22 = vector.multi_reduction <add>, %21, %cst_13 [1, 2] : vector<1x2x128xf32> to vector<1xf32>
    %23 = vector.shape_cast %22 : vector<1xf32> to vector<1x1x1xf32>
    %24 = vector.extract %23[0, 0, 0] : f32 from vector<1x1x1xf32>
    %25 = vector.broadcast %24 : f32 to vector<1x1xf32>
    %cst_14 = arith.constant 3.906250e-03 : f32
    %26 = vector.broadcast %cst_14 : f32 to vector<1x1xf32>
    %27 = arith.mulf %25, %26 : vector<1x1xf32>
    %28 = vector.broadcast %13 : vector<1x1xf32> to vector<2x128xf32>
    %29 = arith.subf %2, %28 : vector<2x128xf32>
    %30 = vector.broadcast %20 : vector<1x1xf32> to vector<2x128xf32>
    %31 = arith.subf %4, %30 : vector<2x128xf32>
    %32 = vector.broadcast %27 : vector<1x1xf32> to vector<2x128xf32>
    %33 = arith.subf %6, %32 : vector<2x128xf32>
    %34 = arith.mulf %29, %29 : vector<2x128xf32>
    %35 = arith.mulf %31, %31 : vector<2x128xf32>
    %36 = arith.addf %34, %35 : vector<2x128xf32>
    %37 = arith.mulf %33, %33 : vector<2x128xf32>
    %38 = arith.addf %36, %37 : vector<2x128xf32>
    %39 = math.sqrt %38 : vector<2x128xf32>
    %40 = vector.shape_cast %39 : vector<2x128xf32> to vector<1x2x128xf32>
    %cst_15 = arith.constant dense<0.000000e+00> : vector<1xf32>
    %41 = vector.multi_reduction <add>, %40, %cst_15 [1, 2] : vector<1x2x128xf32> to vector<1xf32>
    %42 = vector.shape_cast %41 : vector<1xf32> to vector<1x1x1xf32>
    %43 = vector.extract %42[0, 0, 0] : f32 from vector<1x1x1xf32>
    %44 = vector.broadcast %43 : f32 to vector<1x1xf32>
    %45 = arith.addf %0, %44 : vector<1x1xf32>
    %c1_16 = arith.constant 1 : index
    %c0_17 = arith.constant 0 : index
    %c0_18 = arith.constant 0 : index
    %c0_19 = arith.constant 0 : index
    %46 = vector.load %arg1[%c1_16, %c0_17, %c0_18, %c0_19] : memref<2x3x2x128xf32, #tpu.memory_space<vmem>>, vector<1x1x2x128xf32>
    %47 = vector.shape_cast %46 : vector<1x1x2x128xf32> to vector<2x128xf32>
    %c1_20 = arith.constant 1 : index
    %c1_21 = arith.constant 1 : index
    %c0_22 = arith.constant 0 : index
    %c0_23 = arith.constant 0 : index
    %48 = vector.load %arg1[%c1_20, %c1_21, %c0_22, %c0_23] : memref<2x3x2x128xf32, #tpu.memory_space<vmem>>, vector<1x1x2x128xf32>
    %49 = vector.shape_cast %48 : vector<1x1x2x128xf32> to vector<2x128xf32>
    %c1_24 = arith.constant 1 : index
    %c2_25 = arith.constant 2 : index
    %c0_26 = arith.constant 0 : index
    %c0_27 = arith.constant 0 : index
    %50 = vector.load %arg1[%c1_24, %c2_25, %c0_26, %c0_27] : memref<2x3x2x128xf32, #tpu.memory_space<vmem>>, vector<1x1x2x128xf32>
    %51 = vector.shape_cast %50 : vector<1x1x2x128xf32> to vector<2x128xf32>
    %52 = vector.shape_cast %47 : vector<2x128xf32> to vector<1x2x128xf32>
    %cst_28 = arith.constant dense<0.000000e+00> : vector<1xf32>
    %53 = vector.multi_reduction <add>, %52, %cst_28 [1, 2] : vector<1x2x128xf32> to vector<1xf32>
    %54 = vector.shape_cast %53 : vector<1xf32> to vector<1x1x1xf32>
    %55 = vector.extract %54[0, 0, 0] : f32 from vector<1x1x1xf32>
    %56 = vector.broadcast %55 : f32 to vector<1x1xf32>
    %cst_29 = arith.constant 3.906250e-03 : f32
    %57 = vector.broadcast %cst_29 : f32 to vector<1x1xf32>
    %58 = arith.mulf %56, %57 : vector<1x1xf32>
    %59 = vector.shape_cast %49 : vector<2x128xf32> to vector<1x2x128xf32>
    %cst_30 = arith.constant dense<0.000000e+00> : vector<1xf32>
    %60 = vector.multi_reduction <add>, %59, %cst_30 [1, 2] : vector<1x2x128xf32> to vector<1xf32>
    %61 = vector.shape_cast %60 : vector<1xf32> to vector<1x1x1xf32>
    %62 = vector.extract %61[0, 0, 0] : f32 from vector<1x1x1xf32>
    %63 = vector.broadcast %62 : f32 to vector<1x1xf32>
    %cst_31 = arith.constant 3.906250e-03 : f32
    %64 = vector.broadcast %cst_31 : f32 to vector<1x1xf32>
    %65 = arith.mulf %63, %64 : vector<1x1xf32>
    %66 = vector.shape_cast %51 : vector<2x128xf32> to vector<1x2x128xf32>
    %cst_32 = arith.constant dense<0.000000e+00> : vector<1xf32>
    %67 = vector.multi_reduction <add>, %66, %cst_32 [1, 2] : vector<1x2x128xf32> to vector<1xf32>
    %68 = vector.shape_cast %67 : vector<1xf32> to vector<1x1x1xf32>
    %69 = vector.extract %68[0, 0, 0] : f32 from vector<1x1x1xf32>
    %70 = vector.broadcast %69 : f32 to vector<1x1xf32>
    %cst_33 = arith.constant 3.906250e-03 : f32
    %71 = vector.broadcast %cst_33 : f32 to vector<1x1xf32>
    %72 = arith.mulf %70, %71 : vector<1x1xf32>
    %73 = vector.broadcast %58 : vector<1x1xf32> to vector<2x128xf32>
    %74 = arith.subf %47, %73 : vector<2x128xf32>
    %75 = vector.broadcast %65 : vector<1x1xf32> to vector<2x128xf32>
    %76 = arith.subf %49, %75 : vector<2x128xf32>
    %77 = vector.broadcast %72 : vector<1x1xf32> to vector<2x128xf32>
    %78 = arith.subf %51, %77 : vector<2x128xf32>
    %79 = arith.mulf %74, %74 : vector<2x128xf32>
    %80 = arith.mulf %76, %76 : vector<2x128xf32>
    %81 = arith.addf %79, %80 : vector<2x128xf32>
    %82 = arith.mulf %78, %78 : vector<2x128xf32>
    %83 = arith.addf %81, %82 : vector<2x128xf32>
    %84 = math.sqrt %83 : vector<2x128xf32>
    %85 = vector.shape_cast %84 : vector<2x128xf32> to vector<1x2x128xf32>
    %cst_34 = arith.constant dense<0.000000e+00> : vector<1xf32>
    %86 = vector.multi_reduction <add>, %85, %cst_34 [1, 2] : vector<1x2x128xf32> to vector<1xf32>
    %87 = vector.shape_cast %86 : vector<1xf32> to vector<1x1x1xf32>
    %88 = vector.extract %87[0, 0, 0] : f32 from vector<1x1x1xf32>
    %89 = vector.broadcast %88 : f32 to vector<1x1xf32>
    %90 = arith.addf %45, %89 : vector<1x1xf32>
    %c0_35 = arith.constant 0 : index
    %c0_36 = arith.constant 0 : index
    %c0_37 = arith.constant 0 : index
    %91 = vector.load %arg2[%c0_35, %c0_36, %c0_37] : memref<1x1x1xf32, #tpu.memory_space<vmem>>, vector<1x1x1xf32>
    %92 = vector.shape_cast %91 : vector<1x1x1xf32> to vector<1x1xf32>
    %93 = vector.shape_cast %90 : vector<1x1xf32> to vector<1x1x1xf32>
    tpu.vector_store %arg2[%c0_35, %c0_36, %c0_37], %93 {strides = array<i32>} : memref<1x1x1xf32, #tpu.memory_space<vmem>>, vector<1x1x1xf32>,
    return
  }
  func.func @transform_0(%arg0: i32) -> (i32, i32, i32, i32) {
    %c0_i32 = arith.constant 0 : i32
    %c0_i32_0 = arith.constant 0 : i32
    %c0_i32_1 = arith.constant 0 : i32
    %c0_i32_2 = arith.constant 0 : i32
    return %arg0, %c0_i32, %c0_i32_0, %c0_i32_1 : i32, i32, i32, i32
  }
  func.func @transform_1(%arg0: i32) -> (i32, i32, i32) {
    %c0_i32 = arith.constant 0 : i32
    %c0_i32_0 = arith.constant 0 : i32
    %c0_i32_1 = arith.constant 0 : i32
    return %arg0, %c0_i32, %c0_i32_0 : i32, i32, i32
  }
}

</mosaic_0001>

<llo_original>
// kernel: sa_loss.1
$region0: #{sa_loss.1}
  #allocation0 [shape = 'u32[]', space=smem, size = 0x4, offset = 0x4, fixed_abs, tag = 'smem constant byte address 0x4 - core index']
  #allocation1 [shape = 'u32[72,128]{1,0:T(1,128)}', space=vmem, size = 0x9000, scoped, tag = 'internal scratch']
  %s0 = inlined_call_operand.vmem [shape: f32[2,3,2,128], index: 0, kind: input, shape index: {}]
  %s1 = inlined_call_operand.hbm [shape: f32[1,1,1], index: 1, kind: output, shape index: {}]
  %s2 = sld [smem:[#allocation0]]
  $region14: #{sa_loss.1} parent=0
    _
  %s4 = ssub.s32 1, %s2
  %s5 = scalar_select 0, %s4, %s2
  $region1: #{sa_loss.1} parent=0
    #allocation2 [shape = 'u8[512]{0}', space=vmem, size = 0x400, scoped, tag = 'output window, operand 0, single buffered']
    #allocation3 [shape = 's32[1]{0}', space=sflag, size = 0x4, scoped, tag = 'scoped memory for sa_loss.1']
    %6 = vsyncpa [#allocation3], 0
    // Predicated region
    $region2: #{sa_loss.1} parent=1 // pred_check
      _
    $region3: #{sa_loss.1} parent=1 // pred_check_branch
      %8 = sbr.rel (0) target = $region5
    $region4: #{sa_loss.1} parent=1 // pred_region
      _
    $region5: #{sa_loss.1} parent=1 // pred_fallthru
      _
    %v9 = vld [vmem:[%s0] sm:$0x3]
    %s10 = scalar_lea.vmem %s0, 2
    %v11 = vld [vmem:[%s10] sm:$0x3]
    %s12 = scalar_lea.vmem %s0, 4
    %v13 = vld [vmem:[%s12] sm:$0x3]
    %vm14 = vcmask 1041408
    %v15 = vsel %vm14, %v9, 0.0
    %16 = vadd.xlane.f32.xlu0 %v15
    %v17 = vpop.xlane.xlu0 %16
    %v18 = vrot.slane %v17, 4
    %v19 = vadd.f32 %v17, %v18
    %v20 = vrot.slane %v19, 2
    %v21 = vadd.f32 %v19, %v20
    %v22 = vrot.slane %v21, 1
    %v23 = vadd.f32 %v21, %v22
    %s24 = vtos %v23
    %v25 = vstv %s24
    %v26 = vmul.f32 %v25, 0.00390625
    %v27 = vsel %vm14, %v11, 0.0
    %28 = vadd.xlane.f32.xlu0 %v27
    %v29 = vpop.xlane.xlu0 %28
    %v30 = vrot.slane %v29, 4
    %v31 = vadd.f32 %v29, %v30
    %v32 = vrot.slane %v31, 2
    %v33 = vadd.f32 %v31, %v32
    %v34 = vrot.slane %v33, 1
    %v35 = vadd.f32 %v33, %v34
    %s36 = vtos %v35
    %v37 = vstv %s36
    %v38 = vmul.f32 %v37, 0.00390625
    %v39 = vsel %vm14, %v13, 0.0
    %40 = vadd.xlane.f32.xlu0 %v39
    %v41 = vpop.xlane.xlu0 %40
    %v42 = vrot.slane %v41, 4
    %v43 = vadd.f32 %v41, %v42
    %v44 = vrot.slane %v43, 2
    %v45 = vadd.f32 %v43, %v44
    %v46 = vrot.slane %v45, 1
    %v47 = vadd.f32 %v45, %v46
    %s48 = vtos %v47
    %v49 = vstv %s48
    %v50 = vmul.f32 %v49, 0.00390625
    %v51 = vsub.f32 %v9, %v26
    %v52 = vsub.f32 %v11, %v38
    %v53 = vsub.f32 %v13, %v50
    %v54 = vmul.f32 %v51, %v51
    %v55 = vmul.f32 %v52, %v52
    %v56 = vadd.f32 %v54, %v55
    %v57 = vmul.f32 %v53, %v53
    %v58 = vadd.f32 %v56, %v57
    %v59 = vrsqrt.pop %v58
    %v60 = vmul.f32 %v59, %v58
    %v61 = vmul.f32 %v60, %v59
    %v62 = vmul.f32 0.5, %v61
    %v63 = vsub.f32 1.5, %v62
    %v64 = vmul.f32 %v59, %v63
    %v65 = vmul.f32 %v58, %v64
    %vm66 = vcmp.eq.f32.partialorder %v58, inf
    %v67 = vsel %vm66, %v58, %v65
    %vm68 = vcmp.eq.f32.partialorder %v58, 0.0
    %v69 = vand.u32 %v58, 2147483648
    %v70 = vsel %vm68, %v69, %v67
    %v71 = vsel %vm14, %v70, 0.0
    %72 = vadd.xlane.f32.xlu0 %v71
    %v73 = vpop.xlane.xlu0 %72
    %v74 = vrot.slane %v73, 4
    %v75 = vadd.f32 %v73, %v74
    %v76 = vrot.slane %v75, 2
    %v77 = vadd.f32 %v75, %v76
    %v78 = vrot.slane %v77, 1
    %v79 = vadd.f32 %v77, %v78
    %s80 = vtos %v79
    %v81 = vstv %s80
    %v82 = vadd.f32 %v81, 0.0
    %s83 = scalar_lea.vmem %s0, 6
    %v84 = vld [vmem:[%s83] sm:$0x3]
    %s85 = scalar_lea.vmem %s0, 8
    %v86 = vld [vmem:[%s85] sm:$0x3]
    %s87 = scalar_lea.vmem %s0, 10
    %v88 = vld [vmem:[%s87] sm:$0x3]
    %v89 = vsel %vm14, %v84, 0.0
    %90 = vadd.xlane.f32.xlu0 %v89
    %v91 = vpop.xlane.xlu0 %90
    %v92 = vrot.slane %v91, 4
    %v93 = vadd.f32 %v91, %v92
    %v94 = vrot.slane %v93, 2
    %v95 = vadd.f32 %v93, %v94
    %v96 = vrot.slane %v95, 1
    %v97 = vadd.f32 %v95, %v96
    %s98 = vtos %v97
    %v99 = vstv %s98
    %v100 = vmul.f32 %v99, 0.00390625
    %v101 = vsel %vm14, %v86, 0.0
    %102 = vadd.xlane.f32.xlu0 %v101
    %v103 = vpop.xlane.xlu0 %102
    %v104 = vrot.slane %v103, 4
    %v105 = vadd.f32 %v103, %v104
    %v106 = vrot.slane %v105, 2
    %v107 = vadd.f32 %v105, %v106
    %v108 = vrot.slane %v107, 1
    %v109 = vadd.f32 %v107, %v108
    %s110 = vtos %v109
    %v111 = vstv %s110
    %v112 = vmul.f32 %v111, 0.00390625
    %v113 = vsel %vm14, %v88, 0.0
    %114 = vadd.xlane.f32.xlu0 %v113
    %v115 = vpop.xlane.xlu0 %114
    %v116 = vrot.slane %v115, 4
    %v117 = vadd.f32 %v115, %v116
    %v118 = vrot.slane %v117, 2
    %v119 = vadd.f32 %v117, %v118
    %v120 = vrot.slane %v119, 1
    %v121 = vadd.f32 %v119, %v120
    %s122 = vtos %v121
    %v123 = vstv %s122
    %v124 = vmul.f32 %v123, 0.00390625
    %v125 = vsub.f32 %v84, %v100
    %v126 = vsub.f32 %v86, %v112
    %v127 = vsub.f32 %v88, %v124
    %v128 = vmul.f32 %v125, %v125
    %v129 = vmul.f32 %v126, %v126
    %v130 = vadd.f32 %v128, %v129
    %v131 = vmul.f32 %v127, %v127
    %v132 = vadd.f32 %v130, %v131
    %v133 = vrsqrt.pop %v132
    %v134 = vmul.f32 %v133, %v132
    %v135 = vmul.f32 %v134, %v133
    %v136 = vmul.f32 0.5, %v135
    %v137 = vsub.f32 1.5, %v136
    %v138 = vmul.f32 %v133, %v137
    %v139 = vmul.f32 %v132, %v138
    %vm140 = vcmp.eq.f32.partialorder %v132, inf
    %v141 = vsel %vm140, %v132, %v139
    %vm142 = vcmp.eq.f32.partialorder %v132, 0.0
    %v143 = vand.u32 %v132, 2147483648
    %v144 = vsel %vm142, %v143, %v141
    %v145 = vsel %vm14, %v144, 0.0
    %146 = vadd.xlane.f32.xlu0 %v145
    %v147 = vpop.xlane.xlu0 %146
    %v148 = vrot.slane %v147, 4
    %v149 = vadd.f32 %v147, %v148
    %v150 = vrot.slane %v149, 2
    %v151 = vadd.f32 %v149, %v150
    %v152 = vrot.slane %v151, 1
    %v153 = vadd.f32 %v151, %v152
    %s154 = vtos %v153
    %v155 = vstv %s154
    %v156 = vadd.f32 %v82, %v155
    %vm157 = vcmask 0
    %158 = vst.msk [vmem:[#allocation2] sm:$0x1] %vm157, %v156
    // Predicated region
    $region6: #{sa_loss.1} parent=1 // pred_check
      _
    $region7: #{sa_loss.1} parent=1 // pred_check_branch
      %160 = sbr.rel (0) target = $region9
    $region8: #{sa_loss.1} parent=1 // pred_region
      %162 = vsyncadd [#allocation3], 0
      %s164 = sshll.u32 [#allocation2], 4
      %s165 = int_to_ptr.vmem [resolvable:$true] %s164
      %s166 = sshll.u32 %s1, 4
      %s167 = int_to_ptr.hbm [resolvable:$true] %s166
      %169 = dma.vmem_to_hbm [thread:$0]  %s165, 16, %s167, [#allocation3]
    $region9: #{sa_loss.1} parent=1 // pred_fallthru
      _
    // Predicated region
    $region10: #{sa_loss.1} parent=1 // pred_check
      _
    $region11: #{sa_loss.1} parent=1 // pred_check_branch
      %171 = sbr.rel (0) target = $region13
    $region12: #{sa_loss.1} parent=1 // pred_region
      %173 = dma.done [#allocation3], 16
    $region13: #{sa_loss.1} parent=1 // pred_fallthru
      _
    %174 = vsyncpa [#allocation3], 1

</llo_original>
